<compile_context>
chip_gen: v7x
topology: tpu7x:2x2x1
jax: 0.10.0
libtpu: 0.0.40
codegen_flags: <defaults>
</compile_context>

<pallas_src>
import math
from functools import partial

import numpy as np
import jax
import jax.numpy as jnp
from jax.experimental import pallas as pl
from jax.experimental.pallas import tpu as pltpu


# ----------------------------------------------------------------------------
# hardware probes (generation-aware tiling / dtype choices)
# ----------------------------------------------------------------------------
def _tpu_vmem_capacity_bytes():
    try:
        return int(pltpu.get_tpu_info().vmem_capacity_bytes)
    except Exception:
        return 64 << 20   # conservative fallback (v7x per-TensorCore VMEM)


def _needs_f32_vector_math():
    # v5e and older TensorCores have no bf16 VALU -> keep vector math in f32 there.
    try:
        kind = jax.devices()[0].device_kind.lower()
    except Exception:
        return False
    return any(t in kind for t in ("v2", "v3", "v4", "v5"))


# ----------------------------------------------------------------------------
# Pallas kernel: masked single-head attention with folded projections, K == V
# ----------------------------------------------------------------------------
def _mha_folded_kernel(q_ref, kv_ref, m_ref, a_ref, ba_ref, wovT_ref, bf_ref, o_ref,
                       *, f32_compute):
    q = q_ref[...]                                   # (TN, E)    f32
    m = m_ref[...]                                   # (TN, S)    f32, 1 = keep
    kv = kv_ref[...]                                 # (TN, S, E) bf16 (shared K = V)
    if f32_compute:                                  # v5e & older: no bf16 VALU
        kv = kv.astype(jnp.float32)

    # folded + pre-scaled query projection: one (TN,E)x(E,E) bf16 MXU matmul
    qt = jnp.dot(q.astype(jnp.bfloat16), a_ref[...],
                 preferred_element_type=jnp.float32) + ba_ref[...]

    # per-voxel scores (one query per voxel): reduce over E, f32 accumulation
    qt_c = qt if f32_compute else qt.astype(jnp.bfloat16)
    scores = jnp.sum(qt_c[:, None, :] * kv, axis=-1, dtype=jnp.float32)   # (TN, S)

    # additive mask bias (single pass); masked columns underflow to exactly 0 after exp
    scores = scores + (m - 1.0) * jnp.float32(1e30)

    smax = jnp.max(scores, axis=-1, keepdims=True)
    p = jnp.exp(scores - smax)                                            # (TN, S)
    denom = jnp.sum(p, axis=-1, keepdims=True)

    # voxels whose mask is all-False get zero output (the `valid` guard in torch code)
    valid = jnp.sum(m, axis=-1, keepdims=True) > 0.0
    inv = pl.reciprocal(jnp.where(valid, denom, 1.0), approx=True)
    attn = p * inv                                                        # (TN, S)

    attn_c = attn if f32_compute else attn.astype(jnp.bfloat16)
    ctx = jnp.sum(attn_c[:, :, None] * kv, axis=1, dtype=jnp.float32)     # (TN, E)

    # folded V + out projection: one (TN,E)x(E,E) bf16 MXU matmul + fused bias
    out = jnp.dot(ctx.astype(jnp.bfloat16), wovT_ref[...],
                  preferred_element_type=jnp.float32) + bf_ref[...]
    out = jnp.where(valid, out, 0.0)
    o_ref[...] = out.astype(o_ref.dtype)


def fold_mha_params(params):
    """Fold the packed in/out projections of a 1-head nn.MultiheadAttention (eval only).

        scores ~ (q @ A + bA) . k_raw        A  = (Wq^T Wk)/sqrt(E); bk drops in softmax
        out    = (attn @ k_raw) @ WovT + b   WovT = (Wo Wv)^T, b = bv Wo^T + bo
                                             (attn rows sum to 1 for valid voxels)

    A / WovT are stored bf16 (single-pass MXU matmuls); biases stay f32.
    """
    wq, wk, wv, bq, bk, bv, wo, bo = [jnp.asarray(p, jnp.float32) for p in params]
    E = wq.shape[0]
    scale = 1.0 / math.sqrt(E)
    a = (wq.T @ wk) * scale                       # (E, E), scale pre-folded
    ba = (bq @ wk) * scale                        # (1, E)
    wovT = (wo @ wv).T                            # (E, E)  pre-transposed
    bf = bv @ wo.T + bo                           # (1, E)
    return a.astype(jnp.bfloat16), ba, wovT.astype(jnp.bfloat16), bf


def _choose_tile_n(n, s, e, vmem_capacity_bytes, f32_compute, max_tile=1024):
    """Largest multiple-of-8 voxel tile whose working set fits ~40% of this chip's VMEM."""
    budget = int(vmem_capacity_bytes * 0.40)
    per_voxel = (
        2 * 2 * s * e                              # shared K=V bf16 stream, double-buffered
        + (4 if f32_compute else 2) * s * e        # largest in-kernel (tile,S,E) temporary
        + 2 * 4 * s + 4 * 4 * s                    # mask (dbuf) + score/attn f32 temps
        + 4 * 4 * e                                # Q + out f32, double-buffered
    )
    t = budget // max(per_voxel, 1)
    # grid-balance cap: keep >= ~16 grid steps when N is large (8 per TC on dual-TC parts)
    balance_cap = max(256, -(-n // 16))
    t = int(min(t, max_tile, balance_cap, ((n + 7) // 8) * 8))
    return max(8, (t // 8) * 8)


def _plan_tiling(n, s, e):
    cap = _tpu_vmem_capacity_bytes()
    f32_compute = _needs_f32_vector_math()
    tile_n = _choose_tile_n(n, s, e, cap, f32_compute)
    n_padded = int(pl.cdiv(n, tile_n)) * tile_n
    return tile_n, n_padded


def masked_single_head_attention(Q, KV, mask, folded_params, tile_n=None):
    """Q (N, E) f32; KV (N, S, E) (K == V); mask (N, S) float (1 attend / 0 masked).

    The big KV stream should already be bf16 and padded to a multiple of tile_n by the
    caller (so no extra full HBM pass happens here); small inputs are fixed up in place
    for convenience (sanity tests).
    """
    N, S, E = KV.shape
    a, ba, wovT, bf = folded_params

    f32_compute = _needs_f32_vector_math()
    cap = _tpu_vmem_capacity_bytes()
    if tile_n is None:
        tile_n = _choose_tile_n(N, S, E, cap, f32_compute)

    Q = Q.astype(jnp.float32)
    mask = mask.astype(jnp.float32)
    if KV.dtype != jnp.bfloat16:
        KV = KV.astype(jnp.bfloat16)   # main caller already supplies bf16 -> no-op there

    Np = int(pl.cdiv(N, tile_n)) * tile_n
    pad = Np - N
    if pad:  # main caller pre-pads inside its assembly concat -> this path is test-only
        Q = jnp.concatenate([Q, jnp.zeros((pad, E), Q.dtype)], axis=0)
        KV = jnp.concatenate([KV, jnp.zeros((pad, S, E), KV.dtype)], axis=0)
        mask = jnp.concatenate([mask, jnp.zeros((pad, S), mask.dtype)], axis=0)

    # vmem_limit: ~60% of physical capacity (v5e/v6e ~76 MiB, v7x ~38 MiB/TC), capped.
    vmem_limit = min(int(cap * 0.60), 96 << 20)

    kernel = partial(_mha_folded_kernel, f32_compute=f32_compute)
    out = pl.pallas_call(
        kernel,
        out_shape=jax.ShapeDtypeStruct((Np, E), jnp.float32),
        grid_spec=pltpu.PrefetchScalarGridSpec(
            num_scalar_prefetch=0,
            grid=(Np // tile_n,),
            in_specs=[
                pl.BlockSpec((tile_n, E), lambda i: (i, 0)),         # Q
                pl.BlockSpec((tile_n, S, E), lambda i: (i, 0, 0)),   # KV (bf16, K == V)
                pl.BlockSpec((tile_n, S), lambda i: (i, 0)),         # mask
                pl.BlockSpec((E, E), lambda i: (0, 0)),              # folded Wq (bf16)
                pl.BlockSpec((1, E), lambda i: (0, 0)),              # folded bq
                pl.BlockSpec((E, E), lambda i: (0, 0)),              # folded (Wo Wv)^T (bf16)
                pl.BlockSpec((1, E), lambda i: (0, 0)),              # fused output bias
            ],
            out_specs=pl.BlockSpec((tile_n, E), lambda i: (i, 0)),
        ),
        compiler_params=pltpu.CompilerParams(
            dimension_semantics=("parallel",),      # shards voxel tiles over v7x's 2 TCs
            vmem_limit_bytes=vmem_limit,
        ),
    )(Q, KV, mask, a, ba, wovT, bf)
    return out[:N]


def ref_attention(Q, K, V, mask, params):
    """Plain-JAX reference of the original (un-folded) attention, for a sanity check."""
    wq, wk, wv, bq, bk, bv, wo, bo = params
    E = Q.shape[-1]
    qp = Q @ wq.T + bq
    kp = jnp.einsum('nse,fe->nsf', K, wk) + bk[None]
    vp = jnp.einsum('nse,fe->nsf', V, wv) + bv[None]
    scores = jnp.einsum('ne,nse->ns', qp, kp) / math.sqrt(E)
    keep = mask > 0
    scores = jnp.where(keep, scores, -1e30)
    p = jnp.exp(scores - scores.max(-1, keepdims=True)) * keep
    valid = mask.sum(-1, keepdims=True) > 0
    attn = p / jnp.where(valid, p.sum(-1, keepdims=True), 1.0)
    ctx = jnp.einsum('ns,nse->ne', attn, vp)
    out = ctx @ wo.T + bo
    return jnp.where(valid, out, 0.0)


# ----------------------------------------------------------------------------
# JAX glue: geometry, grid_sample, mask construction, scatter (matches torch code)
# ----------------------------------------------------------------------------
def grid_sample_bilinear(img, grid):
    """F.grid_sample(mode='bilinear', padding_mode='zeros', align_corners=False).
    img: (N, C, H, W), grid: (N, P, 2) in [-1, 1]  ->  (N, C, P)."""
    N, C, H, W = img.shape
    x = ((grid[..., 0] + 1.0) * W - 1.0) / 2.0     # (N, P)
    y = ((grid[..., 1] + 1.0) * H - 1.0) / 2.0
    x0 = jnp.floor(x); y0 = jnp.floor(y)
    x1 = x0 + 1.0;     y1 = y0 + 1.0
    wa = (x1 - x) * (y1 - y)
    wb = (x1 - x) * (y - y0)
    wc = (x - x0) * (y1 - y)
    wd = (x - x0) * (y - y0)

    batch_idx = jnp.arange(N)[:, None]

    def gather(xi, yi):
        valid = (xi >= 0) & (xi <= W - 1) & (yi >= 0) & (yi <= H - 1)
        xi_c = jnp.clip(xi, 0, W - 1).astype(jnp.int32)
        yi_c = jnp.clip(yi, 0, H - 1).astype(jnp.int32)
        vals = img[batch_idx, :, yi_c, xi_c]          # (N, P, C)
        vals = jnp.transpose(vals, (0, 2, 1))         # (N, C, P)
        return vals * valid[:, None, :].astype(img.dtype)

    return (gather(x0, y0) * wa[:, None, :] + gather(x0, y1) * wb[:, None, :] +
            gather(x1, y0) * wc[:, None, :] + gather(x1, y1) * wd[:, None, :])


def mmri_i2p_forward(lidar_feat, img_feat, img_metas, pts_metas, params, embed_dims):
    B, C, Hl, Wl = lidar_feat.shape
    _, Ci, H, W = img_feat.shape
    img_feat = img_feat.reshape(B, -1, Ci, H, W)

    coors = np.asarray(pts_metas['pillar_coors'])
    pillars = pts_metas['pillars']
    nppoints = np.asarray(pts_metas['pillars_num_points'])

    folded = fold_mha_params(params)

    q_list, kv_list, mask_list = [], [], []
    b_idx_list, y_idx_list, x_idx_list = [], [], []
    S = None

    for b in range(B):
        sel = np.nonzero(coors[:, 0] == b)[0]
        if sel.size == 0:
            continue
        voxel = pillars[sel]                                      # (Nv, P, pd)
        coor = coors[sel]
        npts = nppoints[sel]
        proj = jnp.asarray(img_metas[b]['lidar2img'], jnp.float32)  # (ncam, 4, 4)
        num_cam = proj.shape[0]
        Nv, max_pts, p_dim = voxel.shape

        pts = voxel.reshape(Nv * max_pts, p_dim)[:, :3]
        # TODO(synk): apply_3d_transformation is identity here (no aug keys in img_metas)
        pts_h = jnp.concatenate([pts, jnp.ones((pts.shape[0], 1), pts.dtype)], axis=-1)
        xyz_cams = jnp.einsum('cij,pj->cpi', proj, pts_h)           # (ncam, P*, 4)

        eps = 1e-5
        mask = xyz_cams[..., 2:3] > eps
        z = jnp.maximum(xyz_cams[..., 2:3], eps)
        xy = xyz_cams[..., 0:2] / z
        ish = img_metas[b]['input_shape']                           # (H_img, W_img)
        xy = jnp.stack([xy[..., 0] / ish[1], xy[..., 1] / ish[0]], axis=-1)
        xy = (xy - 0.5) * 2.0
        mask = (mask & (xy[..., 0:1] > -1.0) & (xy[..., 0:1] < 1.0)
                     & (xy[..., 1:2] > -1.0) & (xy[..., 1:2] < 1.0))

        sampled = grid_sample_bilinear(img_feat[b], xy)             # (ncam, C, P*)
        sampled = jnp.transpose(sampled, (2, 0, 1)).reshape(Nv, max_pts, num_cam, embed_dims)
        mask = jnp.transpose(mask, (1, 0, 2)).reshape(Nv, max_pts, num_cam, 1)

        mask_points = jnp.arange(max_pts)[None, :] < jnp.asarray(npts)[:, None]
        mask = mask & mask_points[:, :, None, None]

        S = max_pts * num_cam
        # cast the dominant K=V stream to bf16 at the source: the single assembly concat
        # below writes half the bytes and the kernel streams it directly (no extra pass)
        kv_list.append(sampled.reshape(Nv, S, embed_dims).astype(jnp.bfloat16))
        mask_list.append(mask.reshape(Nv, S).astype(jnp.float32))

        y_idx = jnp.asarray(coor[:, 2], jnp.int32)
        x_idx = jnp.asarray(coor[:, 3], jnp.int32)
        q_list.append(lidar_feat[b][:, y_idx, x_idx].T)             # (Nv, E)
        b_idx_list.append(jnp.full((Nv,), b, jnp.int32))
        y_idx_list.append(y_idx)
        x_idx_list.append(x_idx)

    if not q_list:
        return lidar_feat

    # one kernel launch over all voxels of all batches -> long grid, real pipelining;
    # padding is folded into the same concat (padded rows have mask == 0 -> zero output)
    N = int(sum(q.shape[0] for q in q_list))
    tile_n, Np = _plan_tiling(N, S, embed_dims)
    pad = Np - N
    if pad:
        q_list.append(jnp.zeros((pad, embed_dims), jnp.float32))
        kv_list.append(jnp.zeros((pad, S, embed_dims), jnp.bfloat16))
        mask_list.append(jnp.zeros((pad, S), jnp.float32))

    Q = jnp.concatenate(q_list, axis=0)
    KV = jnp.concatenate(kv_list, axis=0)
    mask_f = jnp.concatenate(mask_list, axis=0)
    b_idx = jnp.concatenate(b_idx_list, axis=0)
    y_idx = jnp.concatenate(y_idx_list, axis=0)
    x_idx = jnp.concatenate(x_idx_list, axis=0)

    attn = masked_single_head_attention(Q, KV, mask_f, folded, tile_n=tile_n)[:N]

    decorated = jnp.zeros_like(lidar_feat).at[b_idx, :, y_idx, x_idx].set(
        attn.astype(lidar_feat.dtype))
    return decorated + lidar_feat


# ----------------------------------------------------------------------------
# main
# ----------------------------------------------------------------------------
if __name__ == "__main__":
    E = 128           # embed_dims (DeepInteraction uses 128 -> lane-dense output)
    B = 2
    num_cam = 2
    Hl = Wl = 8       # lidar BEV feature spatial size
    H = W = 8         # image feature spatial size
    max_pts = 4
    p_dim = 4
    nv_per_batch = 6
    total = B * nv_per_batch

    key = jax.random.PRNGKey(0)
    keys = jax.random.split(key, 12)

    lidar_feat = jax.random.normal(keys[0], (B, E, Hl, Wl), jnp.float32)
    img_feat = jax.random.normal(keys[1], (B * num_cam, E, H, W), jnp.float32)

    pts_xy = jax.random.uniform(keys[2], (total, max_pts, 2), minval=-2.0, maxval=2.0)
    pts_z = jax.random.uniform(keys[3], (total, max_pts, 1), minval=0.5, maxval=3.0)
    pts_i = jax.random.uniform(keys[4], (total, max_pts, 1))
    pillars = jnp.concatenate([pts_xy, pts_z, pts_i], axis=-1)      # (total, max_pts, 4)

    rng = np.random.RandomState(0)
    coor_list = []
    for b in range(B):
        flat = rng.choice(Hl * Wl, size=nv_per_batch, replace=False)
        for f in flat:
            coor_list.append([b, 0, int(f // Wl), int(f % Wl)])
    pillar_coors = np.asarray(coor_list, dtype=np.int32)
    pillars_num_points = rng.randint(1, max_pts + 1, size=total).astype(np.int32)

    pts_metas = {'pillars': pillars,
                 'pillar_coors': pillar_coors,
                 'pillars_num_points': pillars_num_points}

    def make_proj(f, cx, cy):
        return np.array([[f, 0, cx, 0],
                         [0, f, cy, 0],
                         [0, 0, 1, 0],
                         [0, 0, 0, 1]], dtype=np.float32)

    img_metas = []
    for b in range(B):
        l2i = np.stack([make_proj(10.0, 32.0, 32.0), make_proj(14.0, 28.0, 36.0)])
        img_metas.append({'lidar2img': l2i, 'input_shape': (64, 64)})

    # deterministic parameters of the single-head MultiheadAttention (eval mode, no dropout)
    bound = math.sqrt(6.0 / (4 * E))        # xavier bound of the packed (3E, E) in_proj
    wq = jax.random.uniform(keys[5], (E, E), minval=-bound, maxval=bound)
    wk = jax.random.uniform(keys[6], (E, E), minval=-bound, maxval=bound)
    wv = jax.random.uniform(keys[7], (E, E), minval=-bound, maxval=bound)
    lb = 1.0 / math.sqrt(E)
    wo = jax.random.uniform(keys[8], (E, E), minval=-lb, maxval=lb)
    bq = jnp.zeros((1, E)); bk = jnp.zeros((1, E)); bv = jnp.zeros((1, E)); bo = jnp.zeros((1, E))
    params = (wq, wk, wv, bq, bk, bv, wo, bo)
    folded = fold_mha_params(params)

    # sanity check: folded bf16-streaming Pallas attention vs pure-JAX f32 reference.
    # (reference sees the same bf16-rounded K=V; remaining delta is the kernel's bf16
    #  MXU matmuls / bf16 product path, exercised with a padded tile and an all-masked row)
    tq = jax.random.normal(keys[9], (6, E))
    tk = jax.random.normal(keys[10], (6, 8, E))
    tm = (jax.random.uniform(keys[11], (6, 8)) > 0.4).astype(jnp.float32)
    tm = tm.at[0].set(0.0)                 # exercise the all-masked / `valid` path
    tk_q = tk.astype(jnp.bfloat16).astype(jnp.float32)
    got = masked_single_head_attention(tq, tk, tm, folded)
    want = ref_attention(tq, tk_q, tk_q, tm, params)
    np.testing.assert_allclose(np.asarray(got), np.asarray(want), rtol=2e-2, atol=2e-2)

    out = mmri_i2p_forward(lidar_feat, img_feat, img_metas, pts_metas, params, E)
    out = jax.block_until_ready(out)
    assert out.shape == lidar_feat.shape and out.dtype == jnp.float32
    print("KERNEL_OK")
</pallas_src>

<mosaic_0001>
module attributes {stable_mosaic.version = 11 : i64} {
  func.func @_mha_folded_kernel(%arg0: i32, %arg1: memref<8x128xf32, #tpu.memory_space<vmem>>, %arg2: memref<8x8x128xbf16, #tpu.memory_space<vmem>>, %arg3: memref<8x8xf32, #tpu.memory_space<vmem>>, %arg4: memref<128x128xbf16, #tpu.memory_space<vmem>>, %arg5: memref<1x128xf32, #tpu.memory_space<vmem>>, %arg6: memref<128x128xbf16, #tpu.memory_space<vmem>>, %arg7: memref<1x128xf32, #tpu.memory_space<vmem>>, %arg8: memref<8x128xf32, #tpu.memory_space<vmem>>) attributes {dimension_semantics = [#tpu.dimension_semantics<parallel>], iteration_bounds = array<i64: 1>, scalar_prefetch = 0 : i64, scratch_operands = 0 : i64, tpu.core_type = #tpu.core_type<tc>, window_params = [{transform_indices = @transform_0, window_bounds = array<i64: 8, 128>}, {transform_indices = @transform_1, window_bounds = array<i64: 8, 8, 128>}, {transform_indices = @transform_2, window_bounds = array<i64: 8, 8>}, {pipeline_mode = #tpu.pipeline_mode<synchronous>, transform_indices = @transform_3, window_bounds = array<i64: 128, 128>}, {pipeline_mode = #tpu.pipeline_mode<synchronous>, transform_indices = @transform_4, window_bounds = array<i64: 1, 128>}, {pipeline_mode = #tpu.pipeline_mode<synchronous>, transform_indices = @transform_5, window_bounds = array<i64: 128, 128>}, {pipeline_mode = #tpu.pipeline_mode<synchronous>, transform_indices = @transform_6, window_bounds = array<i64: 1, 128>}, {transform_indices = @transform_7, window_bounds = array<i64: 8, 128>}]} {
    %c0 = arith.constant 0 : index
    %c0_0 = arith.constant 0 : index
    %0 = vector.load %arg1[%c0, %c0_0] : memref<8x128xf32, #tpu.memory_space<vmem>>, vector<8x128xf32>
    %c0_1 = arith.constant 0 : index
    %c0_2 = arith.constant 0 : index
    %1 = vector.load %arg3[%c0_1, %c0_2] : memref<8x8xf32, #tpu.memory_space<vmem>>, vector<8x8xf32>
    %c0_3 = arith.constant 0 : index
    %c0_4 = arith.constant 0 : index
    %c0_5 = arith.constant 0 : index
    %2 = vector.load %arg2[%c0_3, %c0_4, %c0_5] : memref<8x8x128xbf16, #tpu.memory_space<vmem>>, vector<8x8x128xbf16>
    %3 = arith.truncf %0 : vector<8x128xf32> to vector<8x128xbf16>
    %c0_6 = arith.constant 0 : index
    %c0_7 = arith.constant 0 : index
    %4 = vector.load %arg4[%c0_6, %c0_7] : memref<128x128xbf16, #tpu.memory_space<vmem>>, vector<128x128xbf16>
    %cst = arith.constant dense<0.000000e+00> : vector<8x128xf32>
    %5 = tpu.matmul %3, %4, %cst {dimension_numbers = #tpu.dot_dimension_numbers<[1], [0], [0], [1], [0, 0, 1, 1], [], []>} : vector<8x128xbf16>, vector<128x128xbf16>, vector<8x128xf32> -> vector<8x128xf32>
    %c0_8 = arith.constant 0 : index
    %c0_9 = arith.constant 0 : index
    %6 = vector.load %arg5[%c0_8, %c0_9] : memref<1x128xf32, #tpu.memory_space<vmem>>, vector<1x128xf32>
    %7 = vector.broadcast %6 : vector<1x128xf32> to vector<8x128xf32>
    %8 = arith.addf %5, %7 : vector<8x128xf32>
    %9 = arith.truncf %8 : vector<8x128xf32> to vector<8x128xbf16>
    %10 = vector.shape_cast %9 : vector<8x128xbf16> to vector<8x1x128xbf16>
    %11 = vector.broadcast %10 : vector<8x1x128xbf16> to vector<8x8x128xbf16>
    %12 = arith.mulf %11, %2 : vector<8x8x128xbf16>
    %13 = arith.extf %12 : vector<8x8x128xbf16> to vector<8x8x128xf32>
    %cst_10 = arith.constant dense<0.000000e+00> : vector<8x8xf32>
    %14 = vector.multi_reduction <add>, %13, %cst_10 [2] : vector<8x8x128xf32> to vector<8x8xf32>
    %cst_11 = arith.constant 1.000000e+00 : f32
    %15 = vector.broadcast %cst_11 : f32 to vector<8x8xf32>
    %16 = arith.subf %1, %15 : vector<8x8xf32>
    %cst_12 = arith.constant 1.000000e+30 : f32
    %17 = vector.broadcast %cst_12 : f32 to vector<8x8xf32>
    %18 = arith.mulf %16, %17 : vector<8x8xf32>
    %19 = arith.addf %14, %18 : vector<8x8xf32>
    %cst_13 = arith.constant dense<0xFF800000> : vector<8xf32>
    %20 = vector.multi_reduction <maximumf>, %19, %cst_13 [1] : vector<8x8xf32> to vector<8xf32>
    %21 = vector.shape_cast %20 : vector<8xf32> to vector<8x1xf32>
    %22 = vector.broadcast %21 : vector<8x1xf32> to vector<8x8xf32>
    %23 = arith.subf %19, %22 : vector<8x8xf32>
    %24 = math.exp %23 : vector<8x8xf32>
    %cst_14 = arith.constant dense<0.000000e+00> : vector<8xf32>
    %25 = vector.multi_reduction <add>, %24, %cst_14 [1] : vector<8x8xf32> to vector<8xf32>
    %26 = vector.shape_cast %25 : vector<8xf32> to vector<8x1xf32>
    %cst_15 = arith.constant dense<0.000000e+00> : vector<8xf32>
    %27 = vector.multi_reduction <add>, %1, %cst_15 [1] : vector<8x8xf32> to vector<8xf32>
    %28 = vector.shape_cast %27 : vector<8xf32> to vector<8x1xf32>
    %cst_16 = arith.constant 0.000000e+00 : f32
    %29 = vector.broadcast %cst_16 : f32 to vector<8x1xf32>
    %30 = arith.cmpf ogt, %28, %29 : vector<8x1xf32>
    %cst_17 = arith.constant 1.000000e+00 : f32
    %31 = vector.broadcast %cst_17 : f32 to vector<8x1xf32>
    %32 = arith.select %30, %26, %31 : vector<8x1xi1>, vector<8x1xf32>
    %33 = tpu.reciprocal %32 {approx = true} : vector<8x1xf32> -> vector<8x1xf32>
    %34 = vector.broadcast %33 : vector<8x1xf32> to vector<8x8xf32>
    %35 = arith.mulf %24, %34 : vector<8x8xf32>
    %36 = arith.truncf %35 : vector<8x8xf32> to vector<8x8xbf16>
    %37 = vector.shape_cast %36 : vector<8x8xbf16> to vector<8x8x1xbf16>
    %38 = vector.broadcast %37 : vector<8x8x1xbf16> to vector<8x8x128xbf16>
    %39 = arith.mulf %38, %2 : vector<8x8x128xbf16>
    %40 = arith.extf %39 : vector<8x8x128xbf16> to vector<8x8x128xf32>
    %cst_18 = arith.constant dense<0.000000e+00> : vector<8x128xf32>
    %41 = vector.multi_reduction <add>, %40, %cst_18 [1] : vector<8x8x128xf32> to vector<8x128xf32>
    %42 = arith.truncf %41 : vector<8x128xf32> to vector<8x128xbf16>
    %c0_19 = arith.constant 0 : index
    %c0_20 = arith.constant 0 : index
    %43 = vector.load %arg6[%c0_19, %c0_20] : memref<128x128xbf16, #tpu.memory_space<vmem>>, vector<128x128xbf16>
    %cst_21 = arith.constant dense<0.000000e+00> : vector<8x128xf32>
    %44 = tpu.matmul %42, %43, %cst_21 {dimension_numbers = #tpu.dot_dimension_numbers<[1], [0], [0], [1], [0, 0, 1, 1], [], []>} : vector<8x128xbf16>, vector<128x128xbf16>, vector<8x128xf32> -> vector<8x128xf32>
    %c0_22 = arith.constant 0 : index
    %c0_23 = arith.constant 0 : index
    %45 = vector.load %arg7[%c0_22, %c0_23] : memref<1x128xf32, #tpu.memory_space<vmem>>, vector<1x128xf32>
    %46 = vector.broadcast %45 : vector<1x128xf32> to vector<8x128xf32>
    %47 = arith.addf %44, %46 : vector<8x128xf32>
    %cst_24 = arith.constant 0.000000e+00 : f32
    %48 = vector.shape_cast %30 : vector<8x1xi1> to vector<8x1xi1>
    %49 = vector.broadcast %48 : vector<8x1xi1> to vector<8x128xi1>
    %50 = vector.broadcast %cst_24 : f32 to vector<8x128xf32>
    %51 = arith.select %49, %47, %50 : vector<8x128xi1>, vector<8x128xf32>
    %c0_25 = arith.constant 0 : index
    %c0_26 = arith.constant 0 : index
    %52 = vector.load %arg8[%c0_25, %c0_26] : memref<8x128xf32, #tpu.memory_space<vmem>>, vector<8x128xf32>
    tpu.vector_store %arg8[%c0_25, %c0_26], %51 {strides = array<i32>} : memref<8x128xf32, #tpu.memory_space<vmem>>, vector<8x128xf32>,
    return
  }
  func.func @transform_0(%arg0: i32) -> (i32, i32) {
    %c0_i32 = arith.constant 0 : i32
    %c0_i32_0 = arith.constant 0 : i32
    return %arg0, %c0_i32 : i32, i32
  }
  func.func @transform_1(%arg0: i32) -> (i32, i32, i32) {
    %c0_i32 = arith.constant 0 : i32
    %c0_i32_0 = arith.constant 0 : i32
    %c0_i32_1 = arith.constant 0 : i32
    return %arg0, %c0_i32, %c0_i32_0 : i32, i32, i32
  }
  func.func @transform_2(%arg0: i32) -> (i32, i32) {
    %c0_i32 = arith.constant 0 : i32
    %c0_i32_0 = arith.constant 0 : i32
    return %arg0, %c0_i32 : i32, i32
  }
  func.func @transform_3(%arg0: i32) -> (i32, i32) {
    %c0_i32 = arith.constant 0 : i32
    %c0_i32_0 = arith.constant 0 : i32
    %c0_i32_1 = arith.constant 0 : i32
    return %c0_i32, %c0_i32_0 : i32, i32
  }
  func.func @transform_4(%arg0: i32) -> (i32, i32) {
    %c0_i32 = arith.constant 0 : i32
    %c0_i32_0 = arith.constant 0 : i32
    %c0_i32_1 = arith.constant 0 : i32
    return %c0_i32, %c0_i32_0 : i32, i32
  }
  func.func @transform_5(%arg0: i32) -> (i32, i32) {
    %c0_i32 = arith.constant 0 : i32
    %c0_i32_0 = arith.constant 0 : i32
    %c0_i32_1 = arith.constant 0 : i32
    return %c0_i32, %c0_i32_0 : i32, i32
  }
  func.func @transform_6(%arg0: i32) -> (i32, i32) {
    %c0_i32 = arith.constant 0 : i32
    %c0_i32_0 = arith.constant 0 : i32
    %c0_i32_1 = arith.constant 0 : i32
    return %c0_i32, %c0_i32_0 : i32, i32
  }
  func.func @transform_7(%arg0: i32) -> (i32, i32) {
    %c0_i32 = arith.constant 0 : i32
    %c0_i32_0 = arith.constant 0 : i32
    return %arg0, %c0_i32 : i32, i32
  }
}

</mosaic_0001>

<llo_original>
// kernel: tpu_custom_call.1
$region0: #{tpu_custom_call.1}
  #allocation0 [shape = 'u32[]', space=smem, size = 0x4, offset = 0x4, fixed_abs, tag = 'smem constant byte address 0x4 - core index']
  #allocation1 [shape = 'u32[144,128]{1,0:T(1,128)}', space=vmem, size = 0x12000, scoped, tag = 'internal scratch']
  %s0 = inlined_call_operand.hbm [shape: f32[8,128], index: 0, kind: input, shape index: {}]
  %s1 = inlined_call_operand.hbm [shape: bf16[8,8,128], index: 1, kind: input, shape index: {}]
  %s2 = inlined_call_operand.hbm [shape: f32[8,8], index: 2, kind: input, shape index: {}]
  %s3 = inlined_call_operand.hbm [shape: bf16[128,128], index: 3, kind: input, shape index: {}]
  %s4 = inlined_call_operand.vmem [shape: f32[1,128], index: 4, kind: input, shape index: {}]
  %s5 = inlined_call_operand.hbm [shape: bf16[128,128], index: 5, kind: input, shape index: {}]
  %s6 = inlined_call_operand.vmem [shape: f32[1,128], index: 6, kind: input, shape index: {}]
  %s7 = inlined_call_operand.hbm [shape: f32[8,128], index: 7, kind: output, shape index: {}]
  %s8 = sld [smem:[#allocation0]]
  $region58: #{tpu_custom_call.1} parent=0
    _
  %s10 = ssub.s32 1, %s8
  %s11 = scalar_select 0, %s10, %s8
  $region1: #{tpu_custom_call.1} parent=0
    #allocation2 [shape = 'u8[4096]{0}', space=vmem, size = 0x1000, scoped, tag = 'input window, operand 0, single buffered']
    #allocation3 [shape = 's32[1]{0}', space=sflag, size = 0x4, scoped, tag = 'scoped memory for tpu_custom_call.1']
    #allocation4 [shape = 's32[1]{0}', space=sflag, size = 0x4, scoped, tag = 'scoped memory for tpu_custom_call.1']
    #allocation5 [shape = 'u8[16384]{0}', space=vmem, size = 0x4000, scoped, tag = 'input window, operand 1, single buffered']
    #allocation6 [shape = 's32[1]{0}', space=sflag, size = 0x4, scoped, tag = 'scoped memory for tpu_custom_call.1']
    #allocation7 [shape = 'u8[4096]{0}', space=vmem, size = 0x1000, scoped, tag = 'input window, operand 2, single buffered']
    #allocation8 [shape = 'u8[32768]{0}', space=vmem, size = 0x8000, scoped, tag = 'input window, operand 3, single buffered']
    #allocation9 [shape = 's32[1]{0}', space=sflag, size = 0x4, scoped, tag = 'scoped memory for tpu_custom_call.1']
    #allocation10 [shape = 'u8[32768]{0}', space=vmem, size = 0x8000, scoped, tag = 'input window, operand 5, single buffered']
    #allocation11 [shape = 'u8[4096]{0}', space=vmem, size = 0x1000, scoped, tag = 'output window, operand 0, single buffered']
    %12 = vsyncpa [#allocation3], 0
    %13 = vsyncpa [#allocation6], 0
    %14 = vsyncpa [#allocation9], 0
    %15 = vsyncpa [#allocation4], 0
    // Predicated region
    $region2: #{tpu_custom_call.1} parent=1 // pred_check
      _
    $region3: #{tpu_custom_call.1} parent=1 // pred_check_branch
      %17 = sbr.rel (0) target = $region5
    $region4: #{tpu_custom_call.1} parent=1 // pred_region
      %s19 = ssub.s32 128, 128
      %20 = vsyncadd [#allocation3], %s19
      %s22 = sshll.u32 [#allocation2], 4
      %s23 = int_to_ptr.vmem [resolvable:$true] %s22
      %25 = dma.hbm_to_vmem [thread:$0]  %s0, 128, %s23, [#allocation3]
    $region5: #{tpu_custom_call.1} parent=1 // pred_fallthru
      _
    // Predicated region
    $region6: #{tpu_custom_call.1} parent=1 // pred_check
      _
    $region7: #{tpu_custom_call.1} parent=1 // pred_check_branch
      %27 = sbr.rel (0) target = $region9
    $region8: #{tpu_custom_call.1} parent=1 // pred_region
      %s29 = ssub.s32 512, 512
      %30 = vsyncadd [#allocation6], %s29
      %s31 = sshll.u32 [#allocation5], 4
      %s32 = int_to_ptr.vmem [resolvable:$true] %s31
      %37 = dma.hbm_to_vmem [thread:$0]  %s1, 512, %s32, [#allocation6], 64, 64, 4
    $region9: #{tpu_custom_call.1} parent=1 // pred_fallthru
      _
    // Predicated region
    $region10: #{tpu_custom_call.1} parent=1 // pred_check
      _
    $region11: #{tpu_custom_call.1} parent=1 // pred_check_branch
      %39 = sbr.rel (0) target = $region13
    $region12: #{tpu_custom_call.1} parent=1 // pred_region
      %s41 = ssub.s32 128, 128
      %42 = vsyncadd [#allocation6], %s41
      %s44 = sshll.u32 [#allocation7], 4
      %s45 = int_to_ptr.vmem [resolvable:$true] %s44
      %47 = dma.hbm_to_vmem [thread:$0]  %s2, 128, %s45, [#allocation6]
    $region13: #{tpu_custom_call.1} parent=1 // pred_fallthru
      _
    // Predicated region
    $region14: #{tpu_custom_call.1} parent=1 // pred_check
      _
    $region15: #{tpu_custom_call.1} parent=1 // pred_check_branch
      %49 = sbr.rel (0) target = $region17
    $region16: #{tpu_custom_call.1} parent=1 // pred_region
      %s51 = ssub.s32 1024, 1024
      %52 = vsyncadd [#allocation9], %s51
      %s53 = sshll.u32 [#allocation8], 4
      %s54 = int_to_ptr.vmem [resolvable:$true] %s53
      %59 = dma.hbm_to_vmem [thread:$0]  %s3, 1024, %s54, [#allocation9], 64, 64, 4
    $region17: #{tpu_custom_call.1} parent=1 // pred_fallthru
      _
    // Predicated region
    $region18: #{tpu_custom_call.1} parent=1 // pred_check
      _
    $region19: #{tpu_custom_call.1} parent=1 // pred_check_branch
      %61 = sbr.rel (0) target = $region21
    $region20: #{tpu_custom_call.1} parent=1 // pred_region
      _
    $region21: #{tpu_custom_call.1} parent=1 // pred_fallthru
      _
    // Predicated region
    $region22: #{tpu_custom_call.1} parent=1 // pred_check
      _
    $region23: #{tpu_custom_call.1} parent=1 // pred_check_branch
      %63 = sbr.rel (0) target = $region25
    $region24: #{tpu_custom_call.1} parent=1 // pred_region
      %s65 = ssub.s32 1024, 1024
      %66 = vsyncadd [#allocation9], %s65
      %s67 = sshll.u32 [#allocation10], 4
      %s68 = int_to_ptr.vmem [resolvable:$true] %s67
      %73 = dma.hbm_to_vmem [thread:$0]  %s5, 1024, %s68, [#allocation9], 64, 64, 4
    $region25: #{tpu_custom_call.1} parent=1 // pred_fallthru
      _
    // Predicated region
    $region26: #{tpu_custom_call.1} parent=1 // pred_check
      _
    $region27: #{tpu_custom_call.1} parent=1 // pred_check_branch
      %75 = sbr.rel (0) target = $region29
    $region28: #{tpu_custom_call.1} parent=1 // pred_region
      _
    $region29: #{tpu_custom_call.1} parent=1 // pred_fallthru
      _
    // Predicated region
    $region30: #{tpu_custom_call.1} parent=1 // pred_check
      _
    $region31: #{tpu_custom_call.1} parent=1 // pred_check_branch
      %77 = sbr.rel (0) target = $region33
    $region32: #{tpu_custom_call.1} parent=1 // pred_region
      %78 = dma.done [#allocation3], 128
    $region33: #{tpu_custom_call.1} parent=1 // pred_fallthru
      _
    // Predicated region
    $region34: #{tpu_custom_call.1} parent=1 // pred_check
      _
    $region35: #{tpu_custom_call.1} parent=1 // pred_check_branch
      %80 = sbr.rel (0) target = $region37
    $region36: #{tpu_custom_call.1} parent=1 // pred_region
      %81 = dma.done [#allocation6], 512
    $region37: #{tpu_custom_call.1} parent=1 // pred_fallthru
      _
    // Predicated region
    $region38: #{tpu_custom_call.1} parent=1 // pred_check
      _
    $region39: #{tpu_custom_call.1} parent=1 // pred_check_branch
      %83 = sbr.rel (0) target = $region41
    $region40: #{tpu_custom_call.1} parent=1 // pred_region
      %84 = dma.done [#allocation6], 128
    $region41: #{tpu_custom_call.1} parent=1 // pred_fallthru
      _
    // Predicated region
    $region42: #{tpu_custom_call.1} parent=1 // pred_check
      _
    $region43: #{tpu_custom_call.1} parent=1 // pred_check_branch
      %86 = sbr.rel (0) target = $region45
    $region44: #{tpu_custom_call.1} parent=1 // pred_region
      %87 = dma.done [#allocation9], 1024
    $region45: #{tpu_custom_call.1} parent=1 // pred_fallthru
      _
    // Predicated region
    $region46: #{tpu_custom_call.1} parent=1 // pred_check
      _
    $region47: #{tpu_custom_call.1} parent=1 // pred_check_branch
      %89 = sbr.rel (0) target = $region49
    $region48: #{tpu_custom_call.1} parent=1 // pred_region
      %90 = dma.done [#allocation9], 1024
    $region49: #{tpu_custom_call.1} parent=1 // pred_fallthru
      _
    %v92 = vld [vmem:[#allocation2] sm:$0xff]
    %v93 = vld [vmem:[#allocation7] sm:$0xff]
    %v94 = vld [vmem:[#allocation5] sm:$0xf]
    %v95 = vld [vmem:[#allocation5 + $0x4] sm:$0xf]
    %v96 = vld [vmem:[#allocation5 + $0x8] sm:$0xf]
    %v97 = vld [vmem:[#allocation5 + $0xc] sm:$0xf]
    %v98 = vld [vmem:[#allocation5 + $0x10] sm:$0xf]
    %v99 = vld [vmem:[#allocation5 + $0x14] sm:$0xf]
    %v100 = vld [vmem:[#allocation5 + $0x18] sm:$0xf]
    %v101 = vld [vmem:[#allocation5 + $0x1c] sm:$0xf]
    %v102 = vpack.c.bf16 %v92, %v92
    %v103 = vld [vmem:[#allocation8] sm:$0xf]
    %v104 = vld [vmem:[#allocation8 + $0x4] sm:$0xf]
    %v105 = vld [vmem:[#allocation8 + $0x8] sm:$0xf]
    %v106 = vld [vmem:[#allocation8 + $0xc] sm:$0xf]
    %v107 = vld [vmem:[#allocation8 + $0x10] sm:$0xf]
    %v108 = vld [vmem:[#allocation8 + $0x14] sm:$0xf]
    %v109 = vld [vmem:[#allocation8 + $0x18] sm:$0xf]
    %v110 = vld [vmem:[#allocation8 + $0x1c] sm:$0xf]
    %v111 = vld [vmem:[#allocation8 + $0x20] sm:$0xf]
    %v112 = vld [vmem:[#allocation8 + $0x24] sm:$0xf]
    %v113 = vld [vmem:[#allocation8 + $0x28] sm:$0xf]
    %v114 = vld [vmem:[#allocation8 + $0x2c] sm:$0xf]
    %v115 = vld [vmem:[#allocation8 + $0x30] sm:$0xf]
    %v116 = vld [vmem:[#allocation8 + $0x34] sm:$0xf]
    %v117 = vld [vmem:[#allocation8 + $0x38] sm:$0xf]
    %v118 = vld [vmem:[#allocation8 + $0x3c] sm:$0xf]
    %v119 = vld [vmem:[%s4] sm:$0x1]
    %v121 = vlaneseq
    %v122 = vshrl.u32 %v121, 7
    %v123 = vsub.s32 0, %v122
    %v124 = vrot.slane %v119, %v123
    %v142 = vunpack.c.l.b16 %v103
    %v143 = vunpack.c.l.b16 %v104
    %v144 = vunpack.c.l.b16 %v105
    %v145 = vunpack.c.l.b16 %v106
    %v146 = vunpack.c.l.b16 %v107
    %v147 = vunpack.c.l.b16 %v108
    %v148 = vunpack.c.l.b16 %v109
    %v149 = vunpack.c.l.b16 %v110
    %v150 = vunpack.c.l.b16 %v111
    %v151 = vunpack.c.l.b16 %v112
    %v152 = vunpack.c.l.b16 %v113
    %v153 = vunpack.c.l.b16 %v114
    %v154 = vunpack.c.l.b16 %v115
    %v155 = vunpack.c.l.b16 %v116
    %v156 = vunpack.c.l.b16 %v117
    %v157 = vunpack.c.l.b16 %v118
    %v158 = vpack.c.b16 %v143, %v142
    %v159 = vpack.c.b16 %v145, %v144
    %v160 = vpack.c.b16 %v147, %v146
    %v161 = vpack.c.b16 %v149, %v148
    %v162 = vpack.c.b16 %v151, %v150
    %v163 = vpack.c.b16 %v153, %v152
    %v164 = vpack.c.b16 %v155, %v154
    %v165 = vpack.c.b16 %v157, %v156
    %174 = vmatprep.subr.bf16.mxu0 0
    %175 = vmatpush1.bf16.msra.mxu0 %v158
    %176 = vmatprep.subr.bf16.mxu0 0
    %177 = vmatpush1.bf16.msra.mxu0 %v159
    %178 = vmatprep.subr.bf16.mxu0 0
    %179 = vmatpush1.bf16.msra.mxu0 %v160
    %180 = vmatprep.subr.bf16.mxu0 0
    %181 = vmatpush1.bf16.msra.mxu0 %v161
    %182 = vmatprep.subr.bf16.mxu0 0
    %183 = vmatpush1.bf16.msra.mxu0 %v162
    %184 = vmatprep.subr.bf16.mxu0 0
    %185 = vmatpush1.bf16.msra.mxu0 %v163
    %186 = vmatprep.subr.bf16.mxu0 0
    %187 = vmatpush1.bf16.msra.mxu0 %v164
    %188 = vmatprep.subr.bf16.mxu0 0
    %189 = vmatpush1.bf16.msra.mxu0 %v165
    %190 = vmatprep.subr.bf16.mxu0 0
    %191 = vmatpush1.bf16.msra.mxu0 0
    %192 = vmatprep.subr.bf16.mxu0 0
    %193 = vmatpush1.bf16.msra.mxu0 0
    %194 = vmatprep.subr.bf16.mxu0 0
    %195 = vmatpush1.bf16.msra.mxu0 0
    %196 = vmatprep.subr.bf16.mxu0 0
    %197 = vmatpush1.bf16.msra.mxu0 0
    %198 = vmatprep.subr.bf16.mxu0 0
    %199 = vmatpush1.bf16.msra.mxu0 0
    %200 = vmatprep.subr.bf16.mxu0 0
    %201 = vmatpush1.bf16.msra.mxu0 0
    %202 = vmatprep.subr.bf16.mxu0 0
    %203 = vmatpush1.bf16.msra.mxu0 0
    %204 = vmatprep.subr.bf16.mxu0 0
    %205 = vmatpush1.bf16.msra.mxu0 0
    %206 = vmatprep.mubr.bf16.mxu0 0
    %207 = vmatmul.mubr.bf16.gmra.mrb[0].mxu0 %v102
    %v208 = vpop.f32.mrb[0].mxu0
    %v209 = vadd.f32 %v124, %v208
    %v210 = vpop.f32.mrb[0].mxu0
    %v211 = vpop.f32.mrb[0].mxu0
    %v212 = vpop.f32.mrb[0].mxu0
    %213 = vdwg.mxu0
    %v214 = vpack.c.bf16 %v209, %v209
    %v217 = vunpack.c.l.s4 1966171168
    %v218 = vunpack.c.0.s8 %v217
    %v219 = vlaneseq
    %v220 = vshrl.u32 %v219, 7
    %v221 = vsub.s32 %v218, %v220
    %v222 = vrot.slane %v214, %v221
    %v223 = vcombine.high %v222, %v222
    %v225 = vunpack.c.l.s4 1966171168
    %v226 = vunpack.c.0.s8 %v225
    %v227 = vlaneseq
    %v228 = vshrl.u32 %v227, 7
    %v229 = vsub.s32 %v226, %v228
    %v230 = vrot.slane %v222, %v229
    %v232 = vunpack.c.l.s4 1966171168
    %v233 = vunpack.c.0.s8 %v232
    %v234 = vlaneseq
    %v235 = vshrl.u32 %v234, 7
    %v236 = vsub.s32 %v233, %v235
    %v237 = vrot.slane %v223, %v236
    %v238 = vcombine.high %v230, %v230
    %v239 = vcombine.high %v237, %v237
    %v240 = vunpack.i.l.s16 %v230
    %v241 = vunpack.i.h.s16 %v230
    %v242 = vunpack.i.l.s16 %v237
    %v243 = vunpack.i.h.s16 %v237
    %v244 = vunpack.i.l.s16 %v238
    %v245 = vunpack.i.h.s16 %v238
    %v246 = vunpack.i.l.s16 %v239
    %v247 = vunpack.i.h.s16 %v239
    %v248 = vpack.i.b16 %v240, %v240
    %v249 = vpack.i.b16 %v241, %v241
    %v250 = vpack.i.b16 %v242, %v242
    %v251 = vpack.i.b16 %v243, %v243
    %v252 = vpack.i.b16 %v244, %v244
    %v253 = vpack.i.b16 %v245, %v245
    %v254 = vpack.i.b16 %v246, %v246
    %v255 = vpack.i.b16 %v247, %v247
    %v256 = vlaneseq
    %v257 = vshrl.u32 %v256, 7
    %v258 = vsub.s32 0, %v257
    %v259 = vrot.slane %v248, %v258
    %v260 = vlaneseq
    %v261 = vshrl.u32 %v260, 7
    %v262 = vsub.s32 0, %v261
    %v263 = vrot.slane %v249, %v262
    %v264 = vlaneseq
    %v265 = vshrl.u32 %v264, 7
    %v266 = vsub.s32 0, %v265
    %v267 = vrot.slane %v250, %v266
    %v268 = vlaneseq
    %v269 = vshrl.u32 %v268, 7
    %v270 = vsub.s32 0, %v269
    %v271 = vrot.slane %v251, %v270
    %v272 = vlaneseq
    %v273 = vshrl.u32 %v272, 7
    %v274 = vsub.s32 0, %v273
    %v275 = vrot.slane %v252, %v274
    %v276 = vlaneseq
    %v277 = vshrl.u32 %v276, 7
    %v278 = vsub.s32 0, %v277
    %v279 = vrot.slane %v253, %v278
    %v280 = vlaneseq
    %v281 = vshrl.u32 %v280, 7
    %v282 = vsub.s32 0, %v281
    %v283 = vrot.slane %v254, %v282
    %v284 = vlaneseq
    %v285 = vshrl.u32 %v284, 7
    %v286 = vsub.s32 0, %v285
    %v287 = vrot.slane %v255, %v286
    %v289 = vpack.i.b16 %v259, %v259
    %v291 = vlaneseq
    %v292 = vshrl.u32 %v291, 7
    %v293 = vsub.s32 0, %v292
    %v294 = vrot.slane %v289, %v293
    %v296 = vpack.i.b16 %v263, %v263
    %v298 = vlaneseq
    %v299 = vshrl.u32 %v298, 7
    %v300 = vsub.s32 0, %v299
    %v301 = vrot.slane %v296, %v300
    %v303 = vpack.i.b16 %v267, %v267
    %v305 = vlaneseq
    %v306 = vshrl.u32 %v305, 7
    %v307 = vsub.s32 0, %v306
    %v308 = vrot.slane %v303, %v307
    %v310 = vpack.i.b16 %v271, %v271
    %v312 = vlaneseq
    %v313 = vshrl.u32 %v312, 7
    %v314 = vsub.s32 0, %v313
    %v315 = vrot.slane %v310, %v314
    %v317 = vpack.i.b16 %v275, %v275
    %v319 = vlaneseq
    %v320 = vshrl.u32 %v319, 7
    %v321 = vsub.s32 0, %v320
    %v322 = vrot.slane %v317, %v321
    %v324 = vpack.i.b16 %v279, %v279
    %v326 = vlaneseq
    %v327 = vshrl.u32 %v326, 7
    %v328 = vsub.s32 0, %v327
    %v329 = vrot.slane %v324, %v328
    %v331 = vpack.i.b16 %v283, %v283
    %v333 = vlaneseq
    %v334 = vshrl.u32 %v333, 7
    %v335 = vsub.s32 0, %v334
    %v336 = vrot.slane %v331, %v335
    %v338 = vpack.i.b16 %v287, %v287
    %v340 = vlaneseq
    %v341 = vshrl.u32 %v340, 7
    %v342 = vsub.s32 0, %v341
    %v343 = vrot.slane %v338, %v342
    %v344 = vmul.bf16 %v294, %v94
    %v345 = vmul.bf16 %v301, %v95
    %v346 = vmul.bf16 %v308, %v96
    %v347 = vmul.bf16 %v315, %v97
    %v348 = vmul.bf16 %v322, %v98
    %v349 = vmul.bf16 %v329, %v99
    %v350 = vmul.bf16 %v336, %v100
    %v351 = vmul.bf16 %v343, %v101
    %v352 = vunpack.c.l.bf16 %v344
    %v353 = vunpack.c.l.bf16 %v345
    %v354 = vunpack.c.l.bf16 %v346
    %v355 = vunpack.c.l.bf16 %v347
    %v356 = vunpack.c.l.bf16 %v348
    %v357 = vunpack.c.l.bf16 %v349
    %v358 = vunpack.c.l.bf16 %v350
    %v359 = vunpack.c.l.bf16 %v351
    %360 = vadd.xlane.f32.xlu0 %v352
    %v361 = vpop.xlane.xlu0 %360
    %362 = vadd.xlane.f32.xlu0 %v353
    %v363 = vpop.xlane.xlu0 %362
    %364 = vadd.xlane.f32.xlu0 %v354
    %v365 = vpop.xlane.xlu0 %364
    %366 = vadd.xlane.f32.xlu0 %v355
    %v367 = vpop.xlane.xlu0 %366
    %368 = vadd.xlane.f32.xlu0 %v356
    %v369 = vpop.xlane.xlu0 %368
    %370 = vadd.xlane.f32.xlu0 %v357
    %v371 = vpop.xlane.xlu0 %370
    %372 = vadd.xlane.f32.xlu0 %v358
    %v373 = vpop.xlane.xlu0 %372
    %374 = vadd.xlane.f32.xlu0 %v359
    %v375 = vpop.xlane.xlu0 %374
    %v376 = vsub.f32 %v93, 1.0
    %v377 = vmul.f32 %v376, 1e+30
    %v379 = vlaneseq
    %v380 = vshrl.u32 %v379, 7
    %v381 = vsub.s32 0, %v380
    %v382 = vrot.slane %v377, %v381
    %384 = vbcast.lane.b32.xlu0 %v382, 256
    %v385 = vpop.permute.xlu0 %384
    %v386 = vlaneseq
    %v387 = vshrl.u32 %v386, 7
    %v388 = vsub.s32 1, %v387
    %v389 = vrot.slane %v377, %v388
    %391 = vbcast.lane.b32.xlu0 %v389, 256
    %v392 = vpop.permute.xlu0 %391
    %v393 = vlaneseq
    %v394 = vshrl.u32 %v393, 7
    %v395 = vsub.s32 2, %v394
    %v396 = vrot.slane %v377, %v395
    %398 = vbcast.lane.b32.xlu0 %v396, 256
    %v399 = vpop.permute.xlu0 %398
    %v400 = vlaneseq
    %v401 = vshrl.u32 %v400, 7
    %v402 = vsub.s32 3, %v401
    %v403 = vrot.slane %v377, %v402
    %405 = vbcast.lane.b32.xlu0 %v403, 256
    %v406 = vpop.permute.xlu0 %405
    %v407 = vlaneseq
    %v408 = vshrl.u32 %v407, 7
    %v409 = vsub.s32 4, %v408
    %v410 = vrot.slane %v377, %v409
    %412 = vbcast.lane.b32.xlu0 %v410, 256
    %v413 = vpop.permute.xlu0 %412
    %v414 = vlaneseq
    %v415 = vshrl.u32 %v414, 7
    %v416 = vsub.s32 5, %v415
    %v417 = vrot.slane %v377, %v416
    %419 = vbcast.lane.b32.xlu0 %v417, 256
    %v420 = vpop.permute.xlu0 %419
    %v421 = vlaneseq
    %v422 = vshrl.u32 %v421, 7
    %v423 = vsub.s32 6, %v422
    %v424 = vrot.slane %v377, %v423
    %426 = vbcast.lane.b32.xlu0 %v424, 256
    %v427 = vpop.permute.xlu0 %426
    %v428 = vlaneseq
    %v429 = vshrl.u32 %v428, 7
    %v430 = vsub.s32 7, %v429
    %v431 = vrot.slane %v377, %v430
    %433 = vbcast.lane.b32.xlu0 %v431, 256
    %v434 = vpop.permute.xlu0 %433
    %v443 = vadd.f32 %v361, %v385
    %v444 = vadd.f32 %v363, %v392
    %v445 = vadd.f32 %v365, %v399
    %v446 = vadd.f32 %v367, %v406
    %v447 = vadd.f32 %v369, %v413
    %v448 = vadd.f32 %v371, %v420
    %v449 = vadd.f32 %v373, %v427
    %v450 = vadd.f32 %v375, %v434
    %459 = vset.pattern.permute.xlu0 0
    %460 = vperm.xlu0 %459, %v443
    %v461 = vpop.permute.xlu0 %460
    %462 = vset.pattern.permute.xlu0 0
    %463 = vperm.xlu0 %462, %v444
    %v464 = vpop.permute.xlu0 %463
    %465 = vset.pattern.permute.xlu0 0
    %466 = vperm.xlu0 %465, %v445
    %v467 = vpop.permute.xlu0 %466
    %468 = vset.pattern.permute.xlu0 0
    %469 = vperm.xlu0 %468, %v446
    %v470 = vpop.permute.xlu0 %469
    %471 = vset.pattern.permute.xlu0 0
    %472 = vperm.xlu0 %471, %v447
    %v473 = vpop.permute.xlu0 %472
    %474 = vset.pattern.permute.xlu0 0
    %475 = vperm.xlu0 %474, %v448
    %v476 = vpop.permute.xlu0 %475
    %477 = vset.pattern.permute.xlu0 0
    %478 = vperm.xlu0 %477, %v449
    %v479 = vpop.permute.xlu0 %478
    %480 = vset.pattern.permute.xlu0 0
    %481 = vperm.xlu0 %480, %v450
    %v482 = vpop.permute.xlu0 %481
    %v483 = vlaneseq
    %v484 = vand.u32 %v483, 127
    %v485 = vlaneseq
    %v486 = vshrl.u32 %v485, 7
    %v487 = vsub.s32 %v484, %v486
    %v488 = vrot.slane %v461, %v487
    %v489 = vlaneseq
    %v490 = vshrl.u32 %v489, 7
    %v491 = vsub.s32 %v484, %v490
    %v492 = vrot.slane %v464, %v491
    %v493 = vlaneseq
    %v494 = vshrl.u32 %v493, 7
    %v495 = vsub.s32 %v484, %v494
    %v496 = vrot.slane %v467, %v495
    %v497 = vlaneseq
    %v498 = vshrl.u32 %v497, 7
    %v499 = vsub.s32 %v484, %v498
    %v500 = vrot.slane %v470, %v499
    %v501 = vlaneseq
    %v502 = vshrl.u32 %v501, 7
    %v503 = vsub.s32 %v484, %v502
    %v504 = vrot.slane %v473, %v503
    %v505 = vlaneseq
    %v506 = vshrl.u32 %v505, 7
    %v507 = vsub.s32 %v484, %v506
    %v508 = vrot.slane %v476, %v507
    %v509 = vlaneseq
    %v510 = vshrl.u32 %v509, 7
    %v511 = vsub.s32 %v484, %v510
    %v512 = vrot.slane %v479, %v511
    %v513 = vlaneseq
    %v514 = vshrl.u32 %v513, 7
    %v515 = vsub.s32 %v484, %v514
    %v516 = vrot.slane %v482, %v515
    %vm517 = vcmask 1041409
    %v518 = vsel %vm517, %v492, %v488
    %vm519 = vcmask 1042434
    %v520 = vsel %vm519, %v496, %v518
    %vm521 = vcmask 1043459
    %v522 = vsel %vm521, %v500, %v520
    %vm523 = vcmask 1044484
    %v524 = vsel %vm523, %v504, %v522
    %vm525 = vcmask 1045509
    %v526 = vsel %vm525, %v508, %v524
    %vm527 = vcmask 1046534
    %v528 = vsel %vm527, %v512, %v526
    %vm529 = vcmask 1047559
    %v530 = vsel %vm529, %v516, %v528
    %vm532 = vcmask 64512
    %v533 = vsel %vm532, %v530, -inf
    %534 = vmax.xlane.f32.xlu0 %v533
    %v535 = vpop.xlane.xlu0 %534
    %v537 = vlaneseq
    %v538 = vshrl.u32 %v537, 7
    %v539 = vsub.s32 0, %v538
    %v540 = vrot.slane %v535, %v539
    %v541 = vlaneseq
    %v542 = vshrl.u32 %v541, 7
    %v543 = vsub.s32 1, %v542
    %v544 = vrot.slane %v535, %v543
    %v545 = vlaneseq
    %v546 = vshrl.u32 %v545, 7
    %v547 = vsub.s32 2, %v546
    %v548 = vrot.slane %v535, %v547
    %v549 = vlaneseq
    %v550 = vshrl.u32 %v549, 7
    %v551 = vsub.s32 3, %v550
    %v552 = vrot.slane %v535, %v551
    %v553 = vlaneseq
    %v554 = vshrl.u32 %v553, 7
    %v555 = vsub.s32 4, %v554
    %v556 = vrot.slane %v535, %v555
    %v557 = vlaneseq
    %v558 = vshrl.u32 %v557, 7
    %v559 = vsub.s32 5, %v558
    %v560 = vrot.slane %v535, %v559
    %v561 = vlaneseq
    %v562 = vshrl.u32 %v561, 7
    %v563 = vsub.s32 6, %v562
    %v564 = vrot.slane %v535, %v563
    %v565 = vlaneseq
    %v566 = vshrl.u32 %v565, 7
    %v567 = vsub.s32 7, %v566
    %v568 = vrot.slane %v535, %v567
    %v577 = vsub.f32 %v443, %v540
    %v578 = vsub.f32 %v444, %v544
    %v579 = vsub.f32 %v445, %v548
    %v580 = vsub.f32 %v446, %v552
    %v581 = vsub.f32 %v447, %v556
    %v582 = vsub.f32 %v448, %v560
    %v583 = vsub.f32 %v449, %v564
    %v584 = vsub.f32 %v450, %v568
    %v585 = vmul.f32 %v577, 1.442695
    %v586 = vpow.pop %v585
    %v587 = vmul.f32 %v578, 1.442695
    %v588 = vpow.pop %v587
    %v589 = vmul.f32 %v579, 1.442695
    %v590 = vpow.pop %v589
    %v591 = vmul.f32 %v580, 1.442695
    %v592 = vpow.pop %v591
    %v593 = vmul.f32 %v581, 1.442695
    %v594 = vpow.pop %v593
    %v595 = vmul.f32 %v582, 1.442695
    %v596 = vpow.pop %v595
    %v597 = vmul.f32 %v583, 1.442695
    %v598 = vpow.pop %v597
    %v599 = vmul.f32 %v584, 1.442695
    %v600 = vpow.pop %v599
    %609 = vset.pattern.permute.xlu0 0
    %610 = vperm.xlu0 %609, %v586
    %v611 = vpop.permute.xlu0 %610
    %612 = vset.pattern.permute.xlu0 0
    %613 = vperm.xlu0 %612, %v588
    %v614 = vpop.permute.xlu0 %613
    %615 = vset.pattern.permute.xlu0 0
    %616 = vperm.xlu0 %615, %v590
    %v617 = vpop.permute.xlu0 %616
    %618 = vset.pattern.permute.xlu0 0
    %619 = vperm.xlu0 %618, %v592
    %v620 = vpop.permute.xlu0 %619
    %621 = vset.pattern.permute.xlu0 0
    %622 = vperm.xlu0 %621, %v594
    %v623 = vpop.permute.xlu0 %622
    %624 = vset.pattern.permute.xlu0 0
    %625 = vperm.xlu0 %624, %v596
    %v626 = vpop.permute.xlu0 %625
    %627 = vset.pattern.permute.xlu0 0
    %628 = vperm.xlu0 %627, %v598
    %v629 = vpop.permute.xlu0 %628
    %630 = vset.pattern.permute.xlu0 0
    %631 = vperm.xlu0 %630, %v600
    %v632 = vpop.permute.xlu0 %631
    %v633 = vlaneseq
    %v634 = vshrl.u32 %v633, 7
    %v635 = vsub.s32 %v484, %v634
    %v636 = vrot.slane %v611, %v635
    %v637 = vlaneseq
    %v638 = vshrl.u32 %v637, 7
    %v639 = vsub.s32 %v484, %v638
    %v640 = vrot.slane %v614, %v639
    %v641 = vlaneseq
    %v642 = vshrl.u32 %v641, 7
    %v643 = vsub.s32 %v484, %v642
    %v644 = vrot.slane %v617, %v643
    %v645 = vlaneseq
    %v646 = vshrl.u32 %v645, 7
    %v647 = vsub.s32 %v484, %v646
    %v648 = vrot.slane %v620, %v647
    %v649 = vlaneseq
    %v650 = vshrl.u32 %v649, 7
    %v651 = vsub.s32 %v484, %v650
    %v652 = vrot.slane %v623, %v651
    %v653 = vlaneseq
    %v654 = vshrl.u32 %v653, 7
    %v655 = vsub.s32 %v484, %v654
    %v656 = vrot.slane %v626, %v655
    %v657 = vlaneseq
    %v658 = vshrl.u32 %v657, 7
    %v659 = vsub.s32 %v484, %v658
    %v660 = vrot.slane %v629, %v659
    %v661 = vlaneseq
    %v662 = vshrl.u32 %v661, 7
    %v663 = vsub.s32 %v484, %v662
    %v664 = vrot.slane %v632, %v663
    %v665 = vsel %vm517, %v640, %v636
    %v666 = vsel %vm519, %v644, %v665
    %v667 = vsel %vm521, %v648, %v666
    %v668 = vsel %vm523, %v652, %v667
    %v669 = vsel %vm525, %v656, %v668
    %v670 = vsel %vm527, %v660, %v669
    %v671 = vsel %vm529, %v664, %v670
    %v673 = vsel %vm532, %v671, 0.0
    %674 = vadd.xlane.f32.xlu0 %v673
    %v675 = vpop.xlane.xlu0 %674
    %v676 = vsel %vm532, %v93, 0.0
    %677 = vadd.xlane.f32.xlu0 %v676
    %v678 = vpop.xlane.xlu0 %677
    %vm679 = vcmp.gt.f32.partialorder %v678, 0.0
    %v680 = vsel %vm679, %v675, 1.0
    %v681 = vrcp.pop %v680
    %v683 = vlaneseq
    %v684 = vshrl.u32 %v683, 7
    %v685 = vsub.s32 0, %v684
    %v686 = vrot.slane %v681, %v685
    %v687 = vlaneseq
    %v688 = vshrl.u32 %v687, 7
    %v689 = vsub.s32 1, %v688
    %v690 = vrot.slane %v681, %v689
    %v691 = vlaneseq
    %v692 = vshrl.u32 %v691, 7
    %v693 = vsub.s32 2, %v692
    %v694 = vrot.slane %v681, %v693
    %v695 = vlaneseq
    %v696 = vshrl.u32 %v695, 7
    %v697 = vsub.s32 3, %v696
    %v698 = vrot.slane %v681, %v697
    %v699 = vlaneseq
    %v700 = vshrl.u32 %v699, 7
    %v701 = vsub.s32 4, %v700
    %v702 = vrot.slane %v681, %v701
    %v703 = vlaneseq
    %v704 = vshrl.u32 %v703, 7
    %v705 = vsub.s32 5, %v704
    %v706 = vrot.slane %v681, %v705
    %v707 = vlaneseq
    %v708 = vshrl.u32 %v707, 7
    %v709 = vsub.s32 6, %v708
    %v710 = vrot.slane %v681, %v709
    %v711 = vlaneseq
    %v712 = vshrl.u32 %v711, 7
    %v713 = vsub.s32 7, %v712
    %v714 = vrot.slane %v681, %v713
    %v723 = vmul.f32 %v586, %v686
    %v724 = vmul.f32 %v588, %v690
    %v725 = vmul.f32 %v590, %v694
    %v726 = vmul.f32 %v592, %v698
    %v727 = vmul.f32 %v594, %v702
    %v728 = vmul.f32 %v596, %v706
    %v729 = vmul.f32 %v598, %v710
    %v730 = vmul.f32 %v600, %v714
    %v731 = vpack.c.bf16 %v723, %v723
    %v732 = vpack.c.bf16 %v724, %v724
    %v733 = vpack.c.bf16 %v725, %v725
    %v734 = vpack.c.bf16 %v726, %v726
    %v735 = vpack.c.bf16 %v727, %v727
    %v736 = vpack.c.bf16 %v728, %v728
    %v737 = vpack.c.bf16 %v729, %v729
    %v738 = vpack.c.bf16 %v730, %v730
    %740 = vset.pattern.permute.xlu0 0
    %741 = vperm.xlu0 %740, %v731
    %v742 = vpop.permute.xlu0 %741
    %745 = vset.pattern.permute.xlu0 0
    %746 = vperm.xlu0 %745, %v732
    %v747 = vpop.permute.xlu0 %746
    %750 = vset.pattern.permute.xlu0 0
    %751 = vperm.xlu0 %750, %v733
    %v752 = vpop.permute.xlu0 %751
    %755 = vset.pattern.permute.xlu0 0
    %756 = vperm.xlu0 %755, %v734
    %v757 = vpop.permute.xlu0 %756
    %760 = vset.pattern.permute.xlu0 0
    %761 = vperm.xlu0 %760, %v735
    %v762 = vpop.permute.xlu0 %761
    %765 = vset.pattern.permute.xlu0 0
    %766 = vperm.xlu0 %765, %v736
    %v767 = vpop.permute.xlu0 %766
    %770 = vset.pattern.permute.xlu0 0
    %771 = vperm.xlu0 %770, %v737
    %v772 = vpop.permute.xlu0 %771
    %775 = vset.pattern.permute.xlu0 0
    %776 = vperm.xlu0 %775, %v738
    %v777 = vpop.permute.xlu0 %776
    %v779 = vmul.bf16 %v742, %v94
    %v780 = vmul.bf16 %v747, %v95
    %v781 = vmul.bf16 %v752, %v96
    %v782 = vmul.bf16 %v757, %v97
    %v783 = vmul.bf16 %v762, %v98
    %v784 = vmul.bf16 %v767, %v99
    %v785 = vmul.bf16 %v772, %v100
    %v786 = vmul.bf16 %v777, %v101
    %v787 = vunpack.c.l.bf16 %v779
    %v788 = vunpack.c.l.bf16 %v780
    %v789 = vunpack.c.l.bf16 %v781
    %v790 = vunpack.c.l.bf16 %v782
    %v791 = vunpack.c.l.bf16 %v783
    %v792 = vunpack.c.l.bf16 %v784
    %v793 = vunpack.c.l.bf16 %v785
    %v794 = vunpack.c.l.bf16 %v786
    %v795 = vrot.slane %v787, 4
    %v796 = vadd.f32 %v787, %v795
    %v797 = vrot.slane %v796, 2
    %v798 = vadd.f32 %v796, %v797
    %v799 = vrot.slane %v798, 1
    %v800 = vadd.f32 %v798, %v799
    %v801 = vrot.slane %v788, 4
    %v802 = vadd.f32 %v788, %v801
    %v803 = vrot.slane %v802, 2
    %v804 = vadd.f32 %v802, %v803
    %v805 = vrot.slane %v804, 1
    %v806 = vadd.f32 %v804, %v805
    %v807 = vrot.slane %v789, 4
    %v808 = vadd.f32 %v789, %v807
    %v809 = vrot.slane %v808, 2
    %v810 = vadd.f32 %v808, %v809
    %v811 = vrot.slane %v810, 1
    %v812 = vadd.f32 %v810, %v811
    %v813 = vrot.slane %v790, 4
    %v814 = vadd.f32 %v790, %v813
    %v815 = vrot.slane %v814, 2
    %v816 = vadd.f32 %v814, %v815
    %v817 = vrot.slane %v816, 1
    %v818 = vadd.f32 %v816, %v817
    %v819 = vrot.slane %v791, 4
    %v820 = vadd.f32 %v791, %v819
    %v821 = vrot.slane %v820, 2
    %v822 = vadd.f32 %v820, %v821
    %v823 = vrot.slane %v822, 1
    %v824 = vadd.f32 %v822, %v823
    %v825 = vrot.slane %v792, 4
    %v826 = vadd.f32 %v792, %v825
    %v827 = vrot.slane %v826, 2
    %v828 = vadd.f32 %v826, %v827
    %v829 = vrot.slane %v828, 1
    %v830 = vadd.f32 %v828, %v829
    %v831 = vrot.slane %v793, 4
    %v832 = vadd.f32 %v793, %v831
    %v833 = vrot.slane %v832, 2
    %v834 = vadd.f32 %v832, %v833
    %v835 = vrot.slane %v834, 1
    %v836 = vadd.f32 %v834, %v835
    %v837 = vrot.slane %v794, 4
    %v838 = vadd.f32 %v794, %v837
    %v839 = vrot.slane %v838, 2
    %v840 = vadd.f32 %v838, %v839
    %v841 = vrot.slane %v840, 1
    %v842 = vadd.f32 %v840, %v841
    %v843 = vpack.c.bf16 %v800, %v800
    %v844 = vpack.c.bf16 %v806, %v806
    %v845 = vpack.c.bf16 %v812, %v812
    %v846 = vpack.c.bf16 %v818, %v818
    %v847 = vpack.c.bf16 %v824, %v824
    %v848 = vpack.c.bf16 %v830, %v830
    %v849 = vpack.c.bf16 %v836, %v836
    %v850 = vpack.c.bf16 %v842, %v842
    %v851 = vld [vmem:[#allocation10] sm:$0xf]
    %v852 = vld [vmem:[#allocation10 + $0x4] sm:$0xf]
    %v853 = vld [vmem:[#allocation10 + $0x8] sm:$0xf]
    %v854 = vld [vmem:[#allocation10 + $0xc] sm:$0xf]
    %v855 = vld [vmem:[#allocation10 + $0x10] sm:$0xf]
    %v856 = vld [vmem:[#allocation10 + $0x14] sm:$0xf]
    %v857 = vld [vmem:[#allocation10 + $0x18] sm:$0xf]
    %v858 = vld [vmem:[#allocation10 + $0x1c] sm:$0xf]
    %v859 = vld [vmem:[#allocation10 + $0x20] sm:$0xf]
    %v860 = vld [vmem:[#allocation10 + $0x24] sm:$0xf]
    %v861 = vld [vmem:[#allocation10 + $0x28] sm:$0xf]
    %v862 = vld [vmem:[#allocation10 + $0x2c] sm:$0xf]
    %v863 = vld [vmem:[#allocation10 + $0x30] sm:$0xf]
    %v864 = vld [vmem:[#allocation10 + $0x34] sm:$0xf]
    %v865 = vld [vmem:[#allocation10 + $0x38] sm:$0xf]
    %v866 = vld [vmem:[#allocation10 + $0x3c] sm:$0xf]
    %v867 = vld [vmem:[%s6] sm:$0x1]
    %v869 = vlaneseq
    %v870 = vshrl.u32 %v869, 7
    %v871 = vsub.s32 0, %v870
    %v872 = vrot.slane %v867, %v871
    %v882 = vunpack.c.l.b16 %v843
    %v883 = vunpack.c.l.b16 %v844
    %v884 = vunpack.c.l.b16 %v845
    %v885 = vunpack.c.l.b16 %v846
    %v886 = vunpack.c.l.b16 %v847
    %v887 = vunpack.c.l.b16 %v848
    %v888 = vunpack.c.l.b16 %v849
    %v889 = vunpack.c.l.b16 %v850
    %v890 = vsel %vm517, %v883, %v882
    %v891 = vsel %vm519, %v884, %v890
    %v892 = vsel %vm521, %v885, %v891
    %v893 = vsel %vm523, %v886, %v892
    %v894 = vsel %vm525, %v887, %v893
    %v895 = vsel %vm527, %v888, %v894
    %v896 = vsel %vm529, %v889, %v895
    %v897 = vpack.c.b16 %v896, %v896
    %v915 = vunpack.c.l.b16 %v851
    %v916 = vunpack.c.l.b16 %v852
    %v917 = vunpack.c.l.b16 %v853
    %v918 = vunpack.c.l.b16 %v854
    %v919 = vunpack.c.l.b16 %v855
    %v920 = vunpack.c.l.b16 %v856
    %v921 = vunpack.c.l.b16 %v857
    %v922 = vunpack.c.l.b16 %v858
    %v923 = vunpack.c.l.b16 %v859
    %v924 = vunpack.c.l.b16 %v860
    %v925 = vunpack.c.l.b16 %v861
    %v926 = vunpack.c.l.b16 %v862
    %v927 = vunpack.c.l.b16 %v863
    %v928 = vunpack.c.l.b16 %v864
    %v929 = vunpack.c.l.b16 %v865
    %v930 = vunpack.c.l.b16 %v866
    %v931 = vpack.c.b16 %v916, %v915
    %v932 = vpack.c.b16 %v918, %v917
    %v933 = vpack.c.b16 %v920, %v919
    %v934 = vpack.c.b16 %v922, %v921
    %v935 = vpack.c.b16 %v924, %v923
    %v936 = vpack.c.b16 %v926, %v925
    %v937 = vpack.c.b16 %v928, %v927
    %v938 = vpack.c.b16 %v930, %v929
    %947 = vmatprep.subr.bf16.mxu0 0
    %948 = vmatpush1.bf16.msra.mxu0 %v931
    %949 = vmatprep.subr.bf16.mxu0 0
    %950 = vmatpush1.bf16.msra.mxu0 %v932
    %951 = vmatprep.subr.bf16.mxu0 0
    %952 = vmatpush1.bf16.msra.mxu0 %v933
    %953 = vmatprep.subr.bf16.mxu0 0
    %954 = vmatpush1.bf16.msra.mxu0 %v934
    %955 = vmatprep.subr.bf16.mxu0 0
    %956 = vmatpush1.bf16.msra.mxu0 %v935
    %957 = vmatprep.subr.bf16.mxu0 0
    %958 = vmatpush1.bf16.msra.mxu0 %v936
    %959 = vmatprep.subr.bf16.mxu0 0
    %960 = vmatpush1.bf16.msra.mxu0 %v937
    %961 = vmatprep.subr.bf16.mxu0 0
    %962 = vmatpush1.bf16.msra.mxu0 %v938
    %963 = vmatprep.subr.bf16.mxu0 0
    %964 = vmatpush1.bf16.msra.mxu0 0
    %965 = vmatprep.subr.bf16.mxu0 0
    %966 = vmatpush1.bf16.msra.mxu0 0
    %967 = vmatprep.subr.bf16.mxu0 0
    %968 = vmatpush1.bf16.msra.mxu0 0
    %969 = vmatprep.subr.bf16.mxu0 0
    %970 = vmatpush1.bf16.msra.mxu0 0
    %971 = vmatprep.subr.bf16.mxu0 0
    %972 = vmatpush1.bf16.msra.mxu0 0
    %973 = vmatprep.subr.bf16.mxu0 0
    %974 = vmatpush1.bf16.msra.mxu0 0
    %975 = vmatprep.subr.bf16.mxu0 0
    %976 = vmatpush1.bf16.msra.mxu0 0
    %977 = vmatprep.subr.bf16.mxu0 0
    %978 = vmatpush1.bf16.msra.mxu0 0
    %979 = vmatprep.mubr.bf16.mxu0 0
    %980 = vmatmul.mubr.bf16.gmra.mrb[0].mxu0 %v897
    %v981 = vpop.f32.mrb[0].mxu0
    %v982 = vadd.f32 %v872, %v981
    %v983 = vpop.f32.mrb[0].mxu0
    %v984 = vpop.f32.mrb[0].mxu0
    %v985 = vpop.f32.mrb[0].mxu0
    %986 = vdwg.mxu0
    %v987 = vsel %vm679, 1, 0
    %vm988 = vcmp.eq.s32.totalorder %v987, 1
    %v989 = vsel %vm988, %v982, 0.0
    %990 = vst [vmem:[#allocation11] sm:$0xff] %v989
    // Predicated region
    $region50: #{tpu_custom_call.1} parent=1 // pred_check
      _
    $region51: #{tpu_custom_call.1} parent=1 // pred_check_branch
      %992 = sbr.rel (0) target = $region53
    $region52: #{tpu_custom_call.1} parent=1 // pred_region
      %s994 = ssub.s32 128, 128
      %995 = vsyncadd [#allocation4], %s994
      %s997 = sshll.u32 [#allocation11], 4
      %s998 = int_to_ptr.vmem [resolvable:$true] %s997
      %1000 = dma.vmem_to_hbm [thread:$0]  %s998, 128, %s7, [#allocation4]
    $region53: #{tpu_custom_call.1} parent=1 // pred_fallthru
      _
    // Predicated region
    $region54: #{tpu_custom_call.1} parent=1 // pred_check
      _
    $region55: #{tpu_custom_call.1} parent=1 // pred_check_branch
      %1002 = sbr.rel (0) target = $region57
    $region56: #{tpu_custom_call.1} parent=1 // pred_region
      %1003 = dma.done [#allocation4], 128
    $region57: #{tpu_custom_call.1} parent=1 // pred_fallthru
      _
    %1004 = vsyncpa [#allocation3], 1
    %1005 = vsyncpa [#allocation6], 1
    %1006 = vsyncpa [#allocation9], 1
    %1007 = vsyncpa [#allocation4], 1

</llo_original>
